<compile_context>
chip_gen: v6e
topology: v6e:2x2x1
jax: 0.10.0
libtpu: 0.0.40
codegen_flags: <defaults>
</compile_context>

<pallas_src>
import functools

import jax
import jax.numpy as jnp
from jax.experimental import pallas as pl
from jax.experimental.pallas import tpu as pltpu


def _attn_kernel(x_ref, o_ref):
    x = x_ref[...]                                  # (TB, S, Hp), input dtype
    inv_s = 1.0 / x.shape[1]

    # scores[b, s, t] = sum_h x[b, s, h] * x[b, t, h]   (no explicit transpose)
    scores = jnp.einsum("bsh,bth->bst", x, x,
                        preferred_element_type=jnp.float32)        # (TB, S, S)

    # numerically stable softmax over the last (lane) axis, all in f32
    m = jnp.max(scores, axis=-1, keepdims=True)
    e = jnp.exp(scores - m)
    w = e * pl.reciprocal(jnp.sum(e, axis=-1, keepdims=True), approx=True)

    # fold the sequence-mean into the weights:
    #   mean_s(w @ x) == ((1/S) * sum_s w[:, s, :]) @ x
    w_pooled = (jnp.sum(w, axis=1, keepdims=True) * inv_s).astype(x.dtype)  # (TB,1,S)
    pooled = jnp.einsum("bst,bth->bsh", w_pooled, x,
                        preferred_element_type=jnp.float32)        # (TB, 1, Hp)

    o_ref[...] = pooled[:, 0, :].astype(o_ref.dtype)               # (TB, Hp)


def _choose_tb(B, S, Hp, itemsize):
    """Largest sublane-aligned batch tile that fits comfortably in scoped VMEM."""
    # per-batch-element footprint: double-buffered input tile (input dtype) +
    # f32 scores / exp / weights temporaries + f32 pooled row + output row
    per_elem = 2 * S * Hp * itemsize + 3 * S * S * 4 + 2 * Hp * 4 + 4 * S
    cap = max(1, (24 * 1024 * 1024) // per_elem)
    if B <= 8:
        # tiny batch: one block == whole batch (block dim equals the full array
        # dim, so the (8, 128) sublane constraint on the output block holds)
        return B
    # keep >= 2 grid steps (2 TensorCores on v7x) and a sublane-aligned
    # (multiple-of-8) output block
    tb = min(cap, max(8, B // 2))
    return max(8, (tb // 8) * 8)


@functools.partial(jax.jit, static_argnames=("tb",))
def dot_product_attention(lstm_outputs, *, tb=None):
    """Pallas TPU implementation of DotProductAttention.forward.

    lstm_outputs: (B, S, H) -> returns (B, H).
    """
    B, S, H = lstm_outputs.shape
    out_dtype = lstm_outputs.dtype

    # Lane-pad the hidden dim up to a full multiple of 128 lanes. Zero padding
    # does not change the H-contraction (scores), and padded output columns are
    # sliced off below. Keeps every load/store unmasked and lane-dense.
    Hp = max(128, ((H + 127) // 128) * 128)
    x = lstm_outputs
    if Hp != H:
        x = jnp.pad(x, ((0, 0), (0, 0), (0, Hp - H)))

    if tb is None:
        tb = _choose_tb(B, S, Hp, jnp.dtype(out_dtype).itemsize)
    Bp = ((B + tb - 1) // tb) * tb
    if Bp != B:
        # Padded (all-zero) batch rows are harmless: softmax of zero scores is
        # uniform, pooled context of zero values is zero; sliced off below.
        x = jnp.pad(x, ((0, Bp - B), (0, 0), (0, 0)))

    # TODO(synk): for very long sequences (S >~ 2K) the (TB, S, S) scores tile
    # no longer fits VMEM; that regime needs a flash-style KV-tiled online
    # softmax inner loop instead of materializing the full scores matrix.
    out = pl.pallas_call(
        _attn_kernel,
        out_shape=jax.ShapeDtypeStruct((Bp, Hp), out_dtype),
        grid=(Bp // tb,),
        in_specs=[pl.BlockSpec((tb, S, Hp), lambda b: (b, 0, 0))],
        out_specs=pl.BlockSpec((tb, Hp), lambda b: (b, 0)),
        compiler_params=pltpu.CompilerParams(
            dimension_semantics=("parallel",),
            vmem_limit_bytes=32 * 1024 * 1024,
        ),
    )(x)
    return out[:B, :H]


def _reference(lstm_outputs):
    scores = jnp.einsum("bsh,bth->bst", lstm_outputs, lstm_outputs)
    weights = jax.nn.softmax(scores, axis=-1)
    ctx = jnp.einsum("bst,bth->bsh", weights, lstm_outputs)
    return jnp.mean(ctx, axis=1)


if __name__ == "__main__":
    key = jax.random.PRNGKey(0)

    # (batch, seq, hidden) shapes consistent with the module.
    # Second case exercises hidden lane-padding, batch padding and >1 grid step.
    for (B, S, H) in [(2, 8, 32), (10, 16, 96)]:
        x = jax.random.normal(jax.random.fold_in(key, B * 1000 + S),
                              (B, S, H), dtype=jnp.float32)

        out = jax.block_until_ready(dot_product_attention(x))
        ref = jax.block_until_ready(_reference(x))

        assert out.shape == (B, H), (out.shape, (B, H))
        err = float(jnp.max(jnp.abs(out - ref)))
        # approx reciprocal (EUP vrcp) in the softmax denominator => ~1e-3 level
        assert jnp.allclose(out, ref, atol=5e-3, rtol=5e-3), err

    print("KERNEL_OK")
</pallas_src>

<mosaic_0001>
module attributes {stable_mosaic.version = 11 : i64} {
  func.func @_attn_kernel(%arg0: i32, %arg1: memref<2x8x128xf32, #tpu.memory_space<vmem>>, %arg2: memref<2x128xf32, #tpu.memory_space<vmem>>) attributes {dimension_semantics = [#tpu.dimension_semantics<parallel>], iteration_bounds = array<i64: 1>, scalar_prefetch = 0 : i64, scratch_operands = 0 : i64, tpu.core_type = #tpu.core_type<tc>, window_params = [{transform_indices = @transform_0, window_bounds = array<i64: 2, 8, 128>}, {transform_indices = @transform_1, window_bounds = array<i64: 2, 128>}]} {
    %c0 = arith.constant 0 : index
    %c0_0 = arith.constant 0 : index
    %c0_1 = arith.constant 0 : index
    %0 = vector.load %arg1[%c0, %c0_0, %c0_1] : memref<2x8x128xf32, #tpu.memory_space<vmem>>, vector<2x8x128xf32>
    "tpu.trace_start"() <{level = 10 : i32, message = "bsh,bth->bst"}> : () -> ()
    %cst = arith.constant dense<0.000000e+00> : vector<2x8x8xf32>
    %1 = tpu.matmul %0, %0, %cst {dimension_numbers = #tpu.dot_dimension_numbers<[2], [2], [1], [1], [0, 0, 0, 1, 1, 1], [0], [0]>} : vector<2x8x128xf32>, vector<2x8x128xf32>, vector<2x8x8xf32> -> vector<2x8x8xf32>
    "tpu.trace_stop"() : () -> ()
    %cst_2 = arith.constant dense<0xFF800000> : vector<2x8xf32>
    %2 = vector.multi_reduction <maximumf>, %1, %cst_2 [2] : vector<2x8x8xf32> to vector<2x8xf32>
    %3 = vector.shape_cast %2 : vector<2x8xf32> to vector<2x8x1xf32>
    %4 = vector.broadcast %3 : vector<2x8x1xf32> to vector<2x8x8xf32>
    %5 = arith.subf %1, %4 : vector<2x8x8xf32>
    %6 = math.exp %5 : vector<2x8x8xf32>
    %cst_3 = arith.constant dense<0.000000e+00> : vector<2x8xf32>
    %7 = vector.multi_reduction <add>, %6, %cst_3 [2] : vector<2x8x8xf32> to vector<2x8xf32>
    %8 = vector.shape_cast %7 : vector<2x8xf32> to vector<2x8x1xf32>
    %9 = tpu.reciprocal %8 {approx = true} : vector<2x8x1xf32> -> vector<2x8x1xf32>
    %10 = vector.broadcast %9 : vector<2x8x1xf32> to vector<2x8x8xf32>
    %11 = arith.mulf %6, %10 : vector<2x8x8xf32>
    %cst_4 = arith.constant dense<0.000000e+00> : vector<2x8xf32>
    %12 = vector.multi_reduction <add>, %11, %cst_4 [1] : vector<2x8x8xf32> to vector<2x8xf32>
    %13 = vector.shape_cast %12 : vector<2x8xf32> to vector<2x1x8xf32>
    %cst_5 = arith.constant 1.250000e-01 : f32
    %14 = vector.broadcast %cst_5 : f32 to vector<2x1x8xf32>
    %15 = arith.mulf %13, %14 : vector<2x1x8xf32>
    "tpu.trace_start"() <{level = 10 : i32, message = "bst,bth->bsh"}> : () -> ()
    %cst_6 = arith.constant dense<0.000000e+00> : vector<2x1x128xf32>
    %16 = tpu.matmul %15, %0, %cst_6 {dimension_numbers = #tpu.dot_dimension_numbers<[2], [1], [1], [2], [0, 0, 0, 1, 1, 2], [0], [0]>} : vector<2x1x8xf32>, vector<2x8x128xf32>, vector<2x1x128xf32> -> vector<2x1x128xf32>
    "tpu.trace_stop"() : () -> ()
    %17 = vector.shape_cast %16 : vector<2x1x128xf32> to vector<2x128xf32>
    %c0_7 = arith.constant 0 : index
    %c0_8 = arith.constant 0 : index
    %18 = vector.load %arg2[%c0_7, %c0_8] : memref<2x128xf32, #tpu.memory_space<vmem>>, vector<2x128xf32>
    tpu.vector_store %arg2[%c0_7, %c0_8], %17 {strides = array<i32>} : memref<2x128xf32, #tpu.memory_space<vmem>>, vector<2x128xf32>,
    return
  }
  func.func @transform_0(%arg0: i32) -> (i32, i32, i32) {
    %c0_i32 = arith.constant 0 : i32
    %c0_i32_0 = arith.constant 0 : i32
    %c0_i32_1 = arith.constant 0 : i32
    return %arg0, %c0_i32, %c0_i32_0 : i32, i32, i32
  }
  func.func @transform_1(%arg0: i32) -> (i32, i32) {
    %c0_i32 = arith.constant 0 : i32
    %c0_i32_0 = arith.constant 0 : i32
    return %arg0, %c0_i32 : i32, i32
  }
}

</mosaic_0001>

<llo_original>
// kernel: dot_product_attention.1
$region0: #{dot_product_attention.1}
  #allocation0 [shape = 'u32[]', space=smem, size = 0x4, offset = 0x4, fixed_abs, tag = 'smem constant byte address 0x4 - core index']
  #allocation1 [shape = 'u32[144,128]{1,0:T(1,128)}', space=vmem, size = 0x12000, scoped, tag = 'internal scratch']
  %s0 = inlined_call_operand.vmem [shape: f32[2,8,128], index: 0, kind: input, shape index: {}]
  %s1 = inlined_call_operand.hbm [shape: f32[2,128], index: 1, kind: output, shape index: {}]
  %s2 = sld [smem:[#allocation0]]
  $region14: #{dot_product_attention.1} parent=0
    _
  %s4 = ssub.s32 1, %s2
  %s5 = scalar_select 0, %s4, %s2
  $region1: #{dot_product_attention.1} parent=0
    #allocation2 [shape = 'u8[1024]{0}', space=vmem, size = 0x400, scoped, tag = 'output window, operand 0, single buffered']
    #allocation3 [shape = 's32[1]{0}', space=sflag, size = 0x4, scoped, tag = 'scoped memory for dot_product_attention.1']
    %6 = vsyncpa [#allocation3], 0
    // Predicated region
    $region2: #{dot_product_attention.1} parent=1 // pred_check
      _
    $region3: #{dot_product_attention.1} parent=1 // pred_check_branch
      %8 = sbr.rel (0) target = $region5
    $region4: #{dot_product_attention.1} parent=1 // pred_region
      _
    $region5: #{dot_product_attention.1} parent=1 // pred_fallthru
      _
    %v9 = vld [vmem:[%s0] sm:$0xff]
    %v10 = vld [vmem:[%s0 + $0x8] sm:$0xff]
    %11 = vmatprep.subr.mxu0 0.0
    %12 = vmatpush1.xpose.msra.mxu0 0.0
    %13 = vmatprep.subr.mxu0 0.0
    %14 = vmatpush1.xpose.msra.mxu0 0.0
    %15 = vmatprep.subr.mxu0 0.0
    %16 = vmatpush1.xpose.msra.mxu0 0.0
    %17 = vmatprep.subr.mxu0 0.0
    %18 = vmatpush1.xpose.msra.mxu0 0.0
    %19 = vmatprep.subr.mxu0 0.0
    %20 = vmatpush1.xpose.msra.mxu0 0.0
    %21 = vmatprep.subr.mxu0 0.0
    %22 = vmatpush1.xpose.msra.mxu0 0.0
    %23 = vmatprep.subr.mxu0 0.0
    %24 = vmatpush1.xpose.msra.mxu0 0.0
    %25 = vmatprep.subr.mxu0 0.0
    %26 = vmatpush1.xpose.msra.mxu0 0.0
    %27 = vmatprep.subr.mxu0 0.0
    %28 = vmatpush1.xpose.msra.mxu0 0.0
    %29 = vmatprep.subr.mxu0 0.0
    %30 = vmatpush1.xpose.msra.mxu0 0.0
    %31 = vmatprep.subr.mxu0 0.0
    %32 = vmatpush1.xpose.msra.mxu0 0.0
    %33 = vmatprep.subr.mxu0 0.0
    %34 = vmatpush1.xpose.msra.mxu0 0.0
    %35 = vmatprep.subr.mxu0 0.0
    %36 = vmatpush1.xpose.msra.mxu0 0.0
    %37 = vmatprep.subr.mxu0 0.0
    %38 = vmatpush1.xpose.msra.mxu0 0.0
    %39 = vmatprep.subr.mxu0 0.0
    %40 = vmatpush1.xpose.msra.mxu0 0.0
    %41 = vmatprep.subr.mxu0 0.0
    %42 = vmatpush1.xpose.msra.mxu0 %v9
    %43 = vmatprep.subr.mxu0 0.0
    %44 = vmatpush2.xpose.msra.mxu0 0.0
    %45 = vmatprep.subr.mxu0 0.0
    %46 = vmatpush2.xpose.msra.mxu0 0.0
    %47 = vmatprep.subr.mxu0 0.0
    %48 = vmatpush2.xpose.msra.mxu0 0.0
    %49 = vmatprep.subr.mxu0 0.0
    %50 = vmatpush2.xpose.msra.mxu0 0.0
    %51 = vmatprep.subr.mxu0 0.0
    %52 = vmatpush2.xpose.msra.mxu0 0.0
    %53 = vmatprep.subr.mxu0 0.0
    %54 = vmatpush2.xpose.msra.mxu0 0.0
    %55 = vmatprep.subr.mxu0 0.0
    %56 = vmatpush2.xpose.msra.mxu0 0.0
    %57 = vmatprep.subr.mxu0 0.0
    %58 = vmatpush2.xpose.msra.mxu0 0.0
    %59 = vmatprep.subr.mxu0 0.0
    %60 = vmatpush2.xpose.msra.mxu0 0.0
    %61 = vmatprep.subr.mxu0 0.0
    %62 = vmatpush2.xpose.msra.mxu0 0.0
    %63 = vmatprep.subr.mxu0 0.0
    %64 = vmatpush2.xpose.msra.mxu0 0.0
    %65 = vmatprep.subr.mxu0 0.0
    %66 = vmatpush2.xpose.msra.mxu0 0.0
    %67 = vmatprep.subr.mxu0 0.0
    %68 = vmatpush2.xpose.msra.mxu0 0.0
    %69 = vmatprep.subr.mxu0 0.0
    %70 = vmatpush2.xpose.msra.mxu0 0.0
    %71 = vmatprep.subr.mxu0 0.0
    %72 = vmatpush2.xpose.msra.mxu0 0.0
    %73 = vmatprep.subr.mxu0 0.0
    %74 = vmatpush2.xpose.msra.mxu0 0.0
    %75 = vmatprep.mubr.f32.mxu0 0.0
    %76 = vmatmul.mubr.f32.gmra.mxu0 %v9
    %v77 = vpop.f32.mrf.mxu0
    %v78 = vadd.f32 0.0, %v77
    %v79 = vpop.f32.mrf.mxu0
    %80 = vdwg.mxu0
    %81 = vmatprep.subr.mxu0 0.0
    %82 = vmatpush1.xpose.msra.mxu0 0.0
    %83 = vmatprep.subr.mxu0 0.0
    %84 = vmatpush1.xpose.msra.mxu0 0.0
    %85 = vmatprep.subr.mxu0 0.0
    %86 = vmatpush1.xpose.msra.mxu0 0.0
    %87 = vmatprep.subr.mxu0 0.0
    %88 = vmatpush1.xpose.msra.mxu0 0.0
    %89 = vmatprep.subr.mxu0 0.0
    %90 = vmatpush1.xpose.msra.mxu0 0.0
    %91 = vmatprep.subr.mxu0 0.0
    %92 = vmatpush1.xpose.msra.mxu0 0.0
    %93 = vmatprep.subr.mxu0 0.0
    %94 = vmatpush1.xpose.msra.mxu0 0.0
    %95 = vmatprep.subr.mxu0 0.0
    %96 = vmatpush1.xpose.msra.mxu0 0.0
    %97 = vmatprep.subr.mxu0 0.0
    %98 = vmatpush1.xpose.msra.mxu0 0.0
    %99 = vmatprep.subr.mxu0 0.0
    %100 = vmatpush1.xpose.msra.mxu0 0.0
    %101 = vmatprep.subr.mxu0 0.0
    %102 = vmatpush1.xpose.msra.mxu0 0.0
    %103 = vmatprep.subr.mxu0 0.0
    %104 = vmatpush1.xpose.msra.mxu0 0.0
    %105 = vmatprep.subr.mxu0 0.0
    %106 = vmatpush1.xpose.msra.mxu0 0.0
    %107 = vmatprep.subr.mxu0 0.0
    %108 = vmatpush1.xpose.msra.mxu0 0.0
    %109 = vmatprep.subr.mxu0 0.0
    %110 = vmatpush1.xpose.msra.mxu0 0.0
    %111 = vmatprep.subr.mxu0 0.0
    %112 = vmatpush1.xpose.msra.mxu0 %v10
    %113 = vmatprep.subr.mxu0 0.0
    %114 = vmatpush2.xpose.msra.mxu0 0.0
    %115 = vmatprep.subr.mxu0 0.0
    %116 = vmatpush2.xpose.msra.mxu0 0.0
    %117 = vmatprep.subr.mxu0 0.0
    %118 = vmatpush2.xpose.msra.mxu0 0.0
    %119 = vmatprep.subr.mxu0 0.0
    %120 = vmatpush2.xpose.msra.mxu0 0.0
    %121 = vmatprep.subr.mxu0 0.0
    %122 = vmatpush2.xpose.msra.mxu0 0.0
    %123 = vmatprep.subr.mxu0 0.0
    %124 = vmatpush2.xpose.msra.mxu0 0.0
    %125 = vmatprep.subr.mxu0 0.0
    %126 = vmatpush2.xpose.msra.mxu0 0.0
    %127 = vmatprep.subr.mxu0 0.0
    %128 = vmatpush2.xpose.msra.mxu0 0.0
    %129 = vmatprep.subr.mxu0 0.0
    %130 = vmatpush2.xpose.msra.mxu0 0.0
    %131 = vmatprep.subr.mxu0 0.0
    %132 = vmatpush2.xpose.msra.mxu0 0.0
    %133 = vmatprep.subr.mxu0 0.0
    %134 = vmatpush2.xpose.msra.mxu0 0.0
    %135 = vmatprep.subr.mxu0 0.0
    %136 = vmatpush2.xpose.msra.mxu0 0.0
    %137 = vmatprep.subr.mxu0 0.0
    %138 = vmatpush2.xpose.msra.mxu0 0.0
    %139 = vmatprep.subr.mxu0 0.0
    %140 = vmatpush2.xpose.msra.mxu0 0.0
    %141 = vmatprep.subr.mxu0 0.0
    %142 = vmatpush2.xpose.msra.mxu0 0.0
    %143 = vmatprep.subr.mxu0 0.0
    %144 = vmatpush2.xpose.msra.mxu0 0.0
    %145 = vmatprep.mubr.f32.mxu0 0.0
    %146 = vmatmul.mubr.f32.gmra.mxu0 %v10
    %v147 = vpop.f32.mrf.mxu0
    %v148 = vadd.f32 0.0, %v147
    %v149 = vpop.f32.mrf.mxu0
    %150 = vdwg.mxu0
    %vm151 = vcmask 64512
    %v152 = vsel %vm151, %v78, -inf
    %153 = vmax.xlane.f32.xlu0 %v152
    %v154 = vpop.xlane.xlu0 %153
    %v155 = vsel %vm151, %v148, -inf
    %156 = vmax.xlane.f32.xlu0 %v155
    %v157 = vpop.xlane.xlu0 %156
    %v158 = vsub.f32 %v78, %v154
    %v159 = vsub.f32 %v148, %v157
    %v160 = vmul.f32 %v158, 1.442695
    %v161 = vpow.pop %v160
    %v162 = vmul.f32 %v159, 1.442695
    %v163 = vpow.pop %v162
    %v164 = vsel %vm151, %v161, 0.0
    %165 = vadd.xlane.f32.xlu0 %v164
    %v166 = vpop.xlane.xlu0 %165
    %v167 = vsel %vm151, %v163, 0.0
    %168 = vadd.xlane.f32.xlu0 %v167
    %v169 = vpop.xlane.xlu0 %168
    %v170 = vrcp.pop %v166
    %v171 = vrcp.pop %v169
    %v172 = vmul.f32 %v161, %v170
    %v173 = vmul.f32 %v163, %v171
    %v174 = vsel %vm151, %v172, 0.0
    %v175 = vrot.slane %v174, 4
    %v176 = vadd.f32 %v174, %v175
    %v177 = vrot.slane %v176, 2
    %v178 = vadd.f32 %v176, %v177
    %v179 = vrot.slane %v178, 1
    %v180 = vadd.f32 %v178, %v179
    %v181 = vsel %vm151, %v173, 0.0
    %v182 = vrot.slane %v181, 4
    %v183 = vadd.f32 %v181, %v182
    %v184 = vrot.slane %v183, 2
    %v185 = vadd.f32 %v183, %v184
    %v186 = vrot.slane %v185, 1
    %v187 = vadd.f32 %v185, %v186
    %v188 = vmul.f32 %v180, 0.125
    %v189 = vmul.f32 %v187, 0.125
    %v191 = vsel %vm151, %v188, 0
    %193 = vmatprep.subr.mxu0 0.0
    %194 = vmatpush1.msra.mxu0 0.0
    %195 = vmatprep.subr.mxu0 0.0
    %196 = vmatpush1.msra.mxu0 0.0
    %197 = vmatprep.subr.mxu0 0.0
    %198 = vmatpush1.msra.mxu0 0.0
    %199 = vmatprep.subr.mxu0 0.0
    %200 = vmatpush1.msra.mxu0 0.0
    %201 = vmatprep.subr.mxu0 0.0
    %202 = vmatpush1.msra.mxu0 0.0
    %203 = vmatprep.subr.mxu0 0.0
    %204 = vmatpush1.msra.mxu0 0.0
    %205 = vmatprep.subr.mxu0 0.0
    %206 = vmatpush1.msra.mxu0 0.0
    %207 = vmatprep.subr.mxu0 0.0
    %208 = vmatpush1.msra.mxu0 0.0
    %209 = vmatprep.subr.mxu0 0.0
    %210 = vmatpush1.msra.mxu0 0.0
    %211 = vmatprep.subr.mxu0 0.0
    %212 = vmatpush1.msra.mxu0 0.0
    %213 = vmatprep.subr.mxu0 0.0
    %214 = vmatpush1.msra.mxu0 0.0
    %215 = vmatprep.subr.mxu0 0.0
    %216 = vmatpush1.msra.mxu0 0.0
    %217 = vmatprep.subr.mxu0 0.0
    %218 = vmatpush1.msra.mxu0 0.0
    %219 = vmatprep.subr.mxu0 0.0
    %220 = vmatpush1.msra.mxu0 0.0
    %221 = vmatprep.subr.mxu0 0.0
    %222 = vmatpush1.msra.mxu0 0.0
    %223 = vmatprep.subr.mxu0 0.0
    %224 = vmatpush1.msra.mxu0 %v9
    %225 = vmatprep.subr.mxu0 0.0
    %226 = vmatpush2.msra.mxu0 0.0
    %227 = vmatprep.subr.mxu0 0.0
    %228 = vmatpush2.msra.mxu0 0.0
    %229 = vmatprep.subr.mxu0 0.0
    %230 = vmatpush2.msra.mxu0 0.0
    %231 = vmatprep.subr.mxu0 0.0
    %232 = vmatpush2.msra.mxu0 0.0
    %233 = vmatprep.subr.mxu0 0.0
    %234 = vmatpush2.msra.mxu0 0.0
    %235 = vmatprep.subr.mxu0 0.0
    %236 = vmatpush2.msra.mxu0 0.0
    %237 = vmatprep.subr.mxu0 0.0
    %238 = vmatpush2.msra.mxu0 0.0
    %239 = vmatprep.subr.mxu0 0.0
    %240 = vmatpush2.msra.mxu0 0.0
    %241 = vmatprep.subr.mxu0 0.0
    %242 = vmatpush2.msra.mxu0 0.0
    %243 = vmatprep.subr.mxu0 0.0
    %244 = vmatpush2.msra.mxu0 0.0
    %245 = vmatprep.subr.mxu0 0.0
    %246 = vmatpush2.msra.mxu0 0.0
    %247 = vmatprep.subr.mxu0 0.0
    %248 = vmatpush2.msra.mxu0 0.0
    %249 = vmatprep.subr.mxu0 0.0
    %250 = vmatpush2.msra.mxu0 0.0
    %251 = vmatprep.subr.mxu0 0.0
    %252 = vmatpush2.msra.mxu0 0.0
    %253 = vmatprep.subr.mxu0 0.0
    %254 = vmatpush2.msra.mxu0 0.0
    %255 = vmatprep.subr.mxu0 0.0
    %256 = vmatpush2.msra.mxu0 0.0
    %257 = vmatprep.mubr.f32.mxu0 0.0
    %258 = vmatmul.mubr.f32.gmra.mxu0 %v191
    %v259 = vpop.f32.mrf.mxu0
    %v260 = vadd.f32 0.0, %v259
    %v261 = vpop.f32.mrf.mxu0
    %262 = vdwg.mxu0
    %v264 = vsel %vm151, %v189, 0
    %266 = vmatprep.subr.mxu0 0.0
    %267 = vmatpush1.msra.mxu0 0.0
    %268 = vmatprep.subr.mxu0 0.0
    %269 = vmatpush1.msra.mxu0 0.0
    %270 = vmatprep.subr.mxu0 0.0
    %271 = vmatpush1.msra.mxu0 0.0
    %272 = vmatprep.subr.mxu0 0.0
    %273 = vmatpush1.msra.mxu0 0.0
    %274 = vmatprep.subr.mxu0 0.0
    %275 = vmatpush1.msra.mxu0 0.0
    %276 = vmatprep.subr.mxu0 0.0
    %277 = vmatpush1.msra.mxu0 0.0
    %278 = vmatprep.subr.mxu0 0.0
    %279 = vmatpush1.msra.mxu0 0.0
    %280 = vmatprep.subr.mxu0 0.0
    %281 = vmatpush1.msra.mxu0 0.0
    %282 = vmatprep.subr.mxu0 0.0
    %283 = vmatpush1.msra.mxu0 0.0
    %284 = vmatprep.subr.mxu0 0.0
    %285 = vmatpush1.msra.mxu0 0.0
    %286 = vmatprep.subr.mxu0 0.0
    %287 = vmatpush1.msra.mxu0 0.0
    %288 = vmatprep.subr.mxu0 0.0
    %289 = vmatpush1.msra.mxu0 0.0
    %290 = vmatprep.subr.mxu0 0.0
    %291 = vmatpush1.msra.mxu0 0.0
    %292 = vmatprep.subr.mxu0 0.0
    %293 = vmatpush1.msra.mxu0 0.0
    %294 = vmatprep.subr.mxu0 0.0
    %295 = vmatpush1.msra.mxu0 0.0
    %296 = vmatprep.subr.mxu0 0.0
    %297 = vmatpush1.msra.mxu0 %v10
    %298 = vmatprep.subr.mxu0 0.0
    %299 = vmatpush2.msra.mxu0 0.0
    %300 = vmatprep.subr.mxu0 0.0
    %301 = vmatpush2.msra.mxu0 0.0
    %302 = vmatprep.subr.mxu0 0.0
    %303 = vmatpush2.msra.mxu0 0.0
    %304 = vmatprep.subr.mxu0 0.0
    %305 = vmatpush2.msra.mxu0 0.0
    %306 = vmatprep.subr.mxu0 0.0
    %307 = vmatpush2.msra.mxu0 0.0
    %308 = vmatprep.subr.mxu0 0.0
    %309 = vmatpush2.msra.mxu0 0.0
    %310 = vmatprep.subr.mxu0 0.0
    %311 = vmatpush2.msra.mxu0 0.0
    %312 = vmatprep.subr.mxu0 0.0
    %313 = vmatpush2.msra.mxu0 0.0
    %314 = vmatprep.subr.mxu0 0.0
    %315 = vmatpush2.msra.mxu0 0.0
    %316 = vmatprep.subr.mxu0 0.0
    %317 = vmatpush2.msra.mxu0 0.0
    %318 = vmatprep.subr.mxu0 0.0
    %319 = vmatpush2.msra.mxu0 0.0
    %320 = vmatprep.subr.mxu0 0.0
    %321 = vmatpush2.msra.mxu0 0.0
    %322 = vmatprep.subr.mxu0 0.0
    %323 = vmatpush2.msra.mxu0 0.0
    %324 = vmatprep.subr.mxu0 0.0
    %325 = vmatpush2.msra.mxu0 0.0
    %326 = vmatprep.subr.mxu0 0.0
    %327 = vmatpush2.msra.mxu0 0.0
    %328 = vmatprep.subr.mxu0 0.0
    %329 = vmatpush2.msra.mxu0 0.0
    %330 = vmatprep.mubr.f32.mxu0 0.0
    %331 = vmatmul.mubr.f32.gmra.mxu0 %v264
    %v332 = vpop.f32.mrf.mxu0
    %v333 = vadd.f32 0.0, %v332
    %v334 = vpop.f32.mrf.mxu0
    %335 = vdwg.mxu0
    %v338 = vrot.slane %v333, 7
    %vm339 = vcmask 1041409
    %v340 = vsel %vm339, %v338, %v260
    %342 = vst [vmem:[#allocation2] sm:$0x3] %v340
    // Predicated region
    $region6: #{dot_product_attention.1} parent=1 // pred_check
      _
    $region7: #{dot_product_attention.1} parent=1 // pred_check_branch
      %344 = sbr.rel (0) target = $region9
    $region8: #{dot_product_attention.1} parent=1 // pred_region
      %s346 = ssub.s32 32, 32
      %347 = vsyncadd [#allocation3], %s346
      %s349 = sshll.u32 [#allocation2], 4
      %s350 = int_to_ptr.vmem [resolvable:$true] %s349
      %352 = dma.vmem_to_hbm [thread:$0]  %s350, 32, %s1, [#allocation3]
    $region9: #{dot_product_attention.1} parent=1 // pred_fallthru
      _
    // Predicated region
    $region10: #{dot_product_attention.1} parent=1 // pred_check
      _
    $region11: #{dot_product_attention.1} parent=1 // pred_check_branch
      %354 = sbr.rel (0) target = $region13
    $region12: #{dot_product_attention.1} parent=1 // pred_region
      %355 = dma.done [#allocation3], 32
    $region13: #{dot_product_attention.1} parent=1 // pred_fallthru
      _
    %356 = vsyncpa [#allocation3], 1

</llo_original>
